<compile_context>
chip_gen: v7x
topology: tpu7x:2x2x1
jax: 0.10.0
libtpu: 0.0.40
codegen_flags: <defaults>
</compile_context>

<pallas_src>
import functools

import jax
import jax.numpy as jnp
from jax.experimental import pallas as pl
from jax.experimental.pallas import tpu as pltpu

_MIB = 1024 * 1024
# Max number of 128-lane blocks unrolled per step for the NCHW lane-accumulator path.
_LANE_UNROLL_CAP = 16
# Budget for the f32 accumulator scratch (bounds batch packing / lane-acc width).
_ACC_BUDGET_BYTES = 4 * _MIB


def _round_up(v, m):
    return (v + m - 1) // m * m


def _budget_for_device():
    """Returns (input block budget, vmem_limit_bytes) tuned per TPU generation.

    Double-buffered inputs (2 x budget) + f32 accumulator + output stay under
    vmem_limit_bytes.  Scoped-VMEM defaults differ per chip (v5e: 16 MiB,
    v6e/v7x: 32 MiB), so the limit is always passed explicitly.
    """
    try:
        kind = jax.devices()[0].device_kind.lower()
    except Exception:  # defensive: fall back to conservative defaults
        kind = ""
    if "v7" in kind:
        # 64 MiB physical VMEM: 2 x 10 MiB double-buffered blocks + headroom.
        return 10 * _MIB, 44 * _MIB
    if "v6" in kind:
        # 128 MiB physical: bigger blocks amortize the ~0.35 us per-step cost.
        return 14 * _MIB, 64 * _MIB
    if "v5" in kind:
        # v5e scoped default is only 16 MiB -> raise it explicitly.
        return 8 * _MIB, 40 * _MIB
    if "v2" in kind or "v3" in kind:
        # Older chips with small VMEM: stay conservative.
        return 4 * _MIB, 12 * _MIB
    return 8 * _MIB, 40 * _MIB


def _gap_kernel(x_ref, o_ref, acc_ref, *, hw, hw_tile, n_hw, inv, acc_mode):
    """Global-average-pool body.

    acc_mode:
      "lane": x_ref (B, C, hw_tile), acc (B, C, 128) f32 lane-shaped partials
              (pure VPU adds per step; one cross-lane XLU reduce on last step).
      "col" : x_ref (B, C, hw_tile), acc (B, C) f32 (per-step lane reduce;
              HBM-bound regime: huge hw_tile / small C).
      "row" : x_ref (B, hw_tile, C), acc (B, C) f32 (sublane reduce; C stays
              on lanes, no relayout).
    o_ref: (B, 1, C) lane-dense output.
    """
    k = pl.program_id(1)
    last = n_hw - 1
    tail = hw - last * hw_tile          # static: valid length of the final tile

    @pl.when(k == 0)
    def _():
        acc_ref[...] = jnp.zeros_like(acc_ref)

    if acc_mode == "lane":
        def partial_sum(valid):
            # `valid` is static: fully-OOB 128-lane blocks are skipped entirely,
            # only the single partial block (if any) pays the mask.
            nfull, rem = valid // 128, valid % 128
            parts = [x_ref[:, :, j * 128:(j + 1) * 128].astype(jnp.float32)
                     for j in range(nfull)]
            if rem:
                blk = x_ref[:, :, nfull * 128:(nfull + 1) * 128].astype(jnp.float32)
                lane = jax.lax.broadcasted_iota(jnp.int32, blk.shape, 2)
                parts.append(jnp.where(lane < rem, blk, 0.0))
            s = parts[0]
            for p in parts[1:]:
                s = s + p
            return s
    elif acc_mode == "col":
        def partial_sum(valid):
            x = x_ref[...]
            if valid != hw_tile:
                lane = jax.lax.broadcasted_iota(jnp.int32, x.shape, 2)
                x = jnp.where(lane < valid, x, jnp.zeros_like(x))
            # Fused upcast: accumulate in f32 without an f32 copy of the tile.
            return jnp.sum(x, axis=2, dtype=jnp.float32)
    else:  # "row"
        def partial_sum(valid):
            x = x_ref[...]
            if valid != hw_tile:
                sub = jax.lax.broadcasted_iota(jnp.int32, x.shape, 1)
                x = jnp.where(sub < valid, x, jnp.zeros_like(x))
            return jnp.sum(x, axis=1, dtype=jnp.float32)

    # Tail masking only on the last reduction step; steady-state tiles are a
    # plain unmasked accumulate (keeps the kernel HBM-bound, not VALU-bound).
    if tail == hw_tile:
        acc_ref[...] += partial_sum(hw_tile)
    else:
        @pl.when(k < last)
        def _():
            acc_ref[...] += partial_sum(hw_tile)

        @pl.when(k == last)
        def _():
            acc_ref[...] += partial_sum(tail)

    @pl.when(k == last)
    def _():
        acc = acc_ref[...]
        if acc_mode == "lane":
            acc = jnp.sum(acc, axis=2)      # one-time cross-lane reduce -> (B, C)
        o_ref[...] = (acc * inv).astype(o_ref.dtype)[:, None, :]


def _global_avg_pool(x3, red_axis, inv):
    """x3: (N, C, HW) with red_axis=2, or (N, HW, C) with red_axis=1  ->  (N, 1, C)."""
    n = x3.shape[0]
    hw = x3.shape[red_axis]
    c = x3.shape[1] if red_axis == 2 else x3.shape[2]
    itemsize = jnp.dtype(x3.dtype).itemsize
    budget, vmem_limit = _budget_for_device()

    if red_axis == 2:
        unit = 128                                  # HW on the lane axis
        row_bytes = _round_up(c, 8) * itemsize      # VMEM bytes per lane column
    else:
        unit = 8                                    # HW on the sublane axis
        row_bytes = _round_up(c, 128) * itemsize    # VMEM bytes per sublane row

    if hw * row_bytes <= budget or hw <= unit:
        hw_tile = hw
    else:
        hw_tile = max(unit, (budget // row_bytes) // unit * unit)
        hw_tile = min(hw_tile, (hw // unit) * unit)
    n_hw = pl.cdiv(hw, hw_tile)

    # NCHW accumulation mode: lane-shaped f32 partials (pure VPU steady state)
    # when the tile is a small number of 128-lane blocks; otherwise per-step
    # lane reduce (regime where HBM is the binding resource anyway).
    if red_axis == 2 and hw_tile % 128 == 0 and hw_tile // 128 <= _LANE_UNROLL_CAP:
        acc_mode = "lane"
        acc_bytes_per_b = _round_up(c, 8) * 128 * 4
    elif red_axis == 2:
        acc_mode = "col"
        acc_bytes_per_b = _round_up(c, 128) * 4
    else:
        acc_mode = "row"
        acc_bytes_per_b = _round_up(c, 128) * 4

    # cdiv-based batch packing: pack several batch elements per block when the
    # per-batch slab is small (amortizes ~0.35 us per-grid-step overhead); the
    # partial last batch block is masked on write and batches are independent.
    # Keep >= 2 batch grid steps so v7x's second TensorCore gets work.
    block_bytes = max(1, hw_tile * row_bytes)
    b_tile = max(1, min(n, budget // block_bytes,
                        _ACC_BUDGET_BYTES // max(1, acc_bytes_per_b)))
    if n >= 2:
        b_tile = min(b_tile, (n + 1) // 2)
    n_b = pl.cdiv(n, b_tile)

    if acc_mode == "lane" and b_tile * acc_bytes_per_b > _ACC_BUDGET_BYTES:
        # Extremely wide C: fall back to the compact accumulator.
        acc_mode = "col"

    acc_shape = (b_tile, c, 128) if acc_mode == "lane" else (b_tile, c)

    if red_axis == 2:
        in_block = (b_tile, c, hw_tile)
        in_map = lambda b, k: (b, 0, k)
    else:
        in_block = (b_tile, hw_tile, c)
        in_map = lambda b, k: (b, k, 0)

    kernel = functools.partial(
        _gap_kernel, hw=hw, hw_tile=hw_tile, n_hw=n_hw, inv=float(inv),
        acc_mode=acc_mode)

    # TODO(synk): tile the channel axis (extra "parallel" grid dim) for extremely
    # wide C where a single spatial unit already exceeds the block budget; this
    # would also feed v7x's second TensorCore when N == 1.
    return pl.pallas_call(
        kernel,
        out_shape=jax.ShapeDtypeStruct((n, 1, c), x3.dtype),
        grid=(n_b, n_hw),
        in_specs=[pl.BlockSpec(in_block, in_map)],
        out_specs=pl.BlockSpec((b_tile, 1, c), lambda b, k: (b, 0, 0)),
        scratch_shapes=[pltpu.VMEM(acc_shape, jnp.float32)],
        compiler_params=pltpu.CompilerParams(
            dimension_semantics=("parallel", "arbitrary"),
            vmem_limit_bytes=vmem_limit,
        ),
        cost_estimate=pl.CostEstimate(
            flops=n * c * hw,
            transcendentals=0,
            bytes_accessed=n * c * hw * itemsize + n * c * itemsize,
        ),
    )(x3)


def adaptive_avg_pool2d(x, data_format="NHWC"):
    """AdaptiveAvgPool2d(output_size=1) forward.

    channels_first / NCHW: (N, C, H, W) -> (N, C, 1, 1)
    channels_last  / NHWC: (N, H, W, C) -> (N, 1, 1, C)   (layout-native kernel)
    """
    if data_format in ("NCHW", "channels_first"):
        n, c, h, w = x.shape
        hw = h * w
        out = _global_avg_pool(x.reshape(n, c, hw), red_axis=2, inv=1.0 / hw)
        return out.reshape(n, c, 1, 1)
    elif data_format in ("NHWC", "channels_last"):
        n, h, w, c = x.shape
        hw = h * w
        inv = 1.0 / hw
        # Small-C fast path: fold g spatial rows onto the lane axis (free,
        # contiguous reshape) so lanes are not mostly padding for C << 128.
        g = 1
        if c < 128 and hw > 1:
            g = max(1, min(128 // c, hw))
            while g > 1 and hw % g != 0:
                g -= 1
        if g > 1:
            out = _global_avg_pool(x.reshape(n, hw // g, g * c), red_axis=1, inv=inv)
            out = out.astype(jnp.float32).reshape(n, g, c).sum(axis=1).astype(x.dtype)
            return out.reshape(n, 1, 1, c)
        out = _global_avg_pool(x.reshape(n, hw, c), red_axis=1, inv=inv)
        return out.reshape(n, 1, 1, c)
    else:
        raise ValueError(f"unsupported data_format {data_format}")


if __name__ == "__main__":
    key = jax.random.PRNGKey(0)
    N, C, H, W = 2, 4, 16, 16
    x = jax.random.normal(key, (N, C, H, W), dtype=jnp.float32)

    # channels_first (PyTorch NCHW) path
    out_cf = adaptive_avg_pool2d(x, data_format="NCHW")
    out_cf = jax.block_until_ready(out_cf)
    ref_cf = jnp.mean(x, axis=(2, 3), keepdims=True)
    assert out_cf.shape == (N, C, 1, 1)
    assert jnp.allclose(out_cf, ref_cf, atol=1e-5, rtol=1e-5)

    # channels_last (module default 'NHWC') path — kernel is NHWC-native
    x_nhwc = jnp.transpose(x, (0, 2, 3, 1))
    out_cl = adaptive_avg_pool2d(x_nhwc, data_format="NHWC")
    out_cl = jax.block_until_ready(out_cl)
    ref_cl = jnp.mean(x_nhwc, axis=(1, 2), keepdims=True)
    assert out_cl.shape == (N, 1, 1, C)
    assert jnp.allclose(out_cl, ref_cl, atol=1e-5, rtol=1e-5)

    print("KERNEL_OK")
</pallas_src>

<mosaic_0001>
module attributes {stable_mosaic.version = 11 : i64} {
  func.func @_gap_kernel(%arg0: i32, %arg1: i32, %arg2: memref<1x4x256xf32, #tpu.memory_space<vmem>>, %arg3: memref<1x1x4xf32, #tpu.memory_space<vmem>>, %arg4: memref<1x4x128xf32, #tpu.memory_space<vmem>>) attributes {dimension_semantics = [#tpu.dimension_semantics<parallel>, #tpu.dimension_semantics<arbitrary>], iteration_bounds = array<i64: 2, 1>, scalar_prefetch = 0 : i64, scratch_operands = 1 : i64, tpu.core_type = #tpu.core_type<tc>, window_params = [{transform_indices = @transform_0, window_bounds = array<i64: 1, 4, 256>}, {transform_indices = @transform_1, window_bounds = array<i64: 1, 1, 4>}]} {
    %c0_i32 = arith.constant 0 : i32
    %0 = arith.cmpi eq, %arg1, %c0_i32 : i32
    %1 = arith.extui %0 : i1 to i32
    %c0_i32_0 = arith.constant 0 : i32
    %2 = arith.cmpi ne, %1, %c0_i32_0 : i32
    scf.if %2 {
      %cst = arith.constant 0.000000e+00 : f32
      %12 = vector.broadcast %cst : f32 to vector<1x4x128xf32>
      %c0_13 = arith.constant 0 : index
      %c0_14 = arith.constant 0 : index
      %c0_15 = arith.constant 0 : index
      %13 = vector.load %arg4[%c0_13, %c0_14, %c0_15] : memref<1x4x128xf32, #tpu.memory_space<vmem>>, vector<1x4x128xf32>
      tpu.vector_store %arg4[%c0_13, %c0_14, %c0_15], %12 {strides = array<i32>} : memref<1x4x128xf32, #tpu.memory_space<vmem>>, vector<1x4x128xf32>,
    } else {
    }
    %c0 = arith.constant 0 : index
    %c0_1 = arith.constant 0 : index
    %c0_2 = arith.constant 0 : index
    %3 = vector.load %arg4[%c0, %c0_1, %c0_2] : memref<1x4x128xf32, #tpu.memory_space<vmem>>, vector<1x4x128xf32>
    %c0_3 = arith.constant 0 : index
    %c0_4 = arith.constant 0 : index
    %c0_5 = arith.constant 0 : index
    %4 = vector.load %arg2[%c0_3, %c0_4, %c0_5] : memref<1x4x256xf32, #tpu.memory_space<vmem>>, vector<1x4x128xf32>
    %c0_6 = arith.constant 0 : index
    %c0_7 = arith.constant 0 : index
    %c128 = arith.constant 128 : index
    %5 = vector.load %arg2[%c0_6, %c0_7, %c128] : memref<1x4x256xf32, #tpu.memory_space<vmem>>, vector<1x4x128xf32>
    %6 = arith.addf %4, %5 : vector<1x4x128xf32>
    %7 = arith.addf %3, %6 : vector<1x4x128xf32>
    %c0_8 = arith.constant 0 : index
    %c0_9 = arith.constant 0 : index
    %c0_10 = arith.constant 0 : index
    %8 = vector.load %arg4[%c0_8, %c0_9, %c0_10] : memref<1x4x128xf32, #tpu.memory_space<vmem>>, vector<1x4x128xf32>
    tpu.vector_store %arg4[%c0_8, %c0_9, %c0_10], %7 {strides = array<i32>} : memref<1x4x128xf32, #tpu.memory_space<vmem>>, vector<1x4x128xf32>,
    %c0_i32_11 = arith.constant 0 : i32
    %9 = arith.cmpi eq, %arg1, %c0_i32_11 : i32
    %10 = arith.extui %9 : i1 to i32
    %c0_i32_12 = arith.constant 0 : i32
    %11 = arith.cmpi ne, %10, %c0_i32_12 : i32
    scf.if %11 {
      %c0_13 = arith.constant 0 : index
      %c0_14 = arith.constant 0 : index
      %c0_15 = arith.constant 0 : index
      %12 = vector.load %arg4[%c0_13, %c0_14, %c0_15] : memref<1x4x128xf32, #tpu.memory_space<vmem>>, vector<1x4x128xf32>
      %cst = arith.constant dense<0.000000e+00> : vector<1x4xf32>
      %13 = vector.multi_reduction <add>, %12, %cst [2] : vector<1x4x128xf32> to vector<1x4xf32>
      %cst_16 = arith.constant 3.906250e-03 : f32
      %14 = vector.broadcast %cst_16 : f32 to vector<1x4xf32>
      %15 = arith.mulf %13, %14 : vector<1x4xf32>
      %16 = vector.shape_cast %15 : vector<1x4xf32> to vector<1x1x4xf32>
      %c0_17 = arith.constant 0 : index
      %c0_18 = arith.constant 0 : index
      %c0_19 = arith.constant 0 : index
      %17 = vector.load %arg3[%c0_17, %c0_18, %c0_19] : memref<1x1x4xf32, #tpu.memory_space<vmem>>, vector<1x1x4xf32>
      tpu.vector_store %arg3[%c0_17, %c0_18, %c0_19], %16 {strides = array<i32>} : memref<1x1x4xf32, #tpu.memory_space<vmem>>, vector<1x1x4xf32>,
    } else {
    }
    return
  }
  func.func @transform_0(%arg0: i32, %arg1: i32) -> (i32, i32, i32) {
    %c0_i32 = arith.constant 0 : i32
    %c0_i32_0 = arith.constant 0 : i32
    return %arg0, %c0_i32, %arg1 : i32, i32, i32
  }
  func.func @transform_1(%arg0: i32, %arg1: i32) -> (i32, i32, i32) {
    %c0_i32 = arith.constant 0 : i32
    %c0_i32_0 = arith.constant 0 : i32
    %c0_i32_1 = arith.constant 0 : i32
    return %arg0, %c0_i32, %c0_i32_0 : i32, i32, i32
  }
}

</mosaic_0001>

<llo_original>
// kernel: tpu_custom_call.1
$region0: #{tpu_custom_call.1}
  #allocation0 [shape = 'u32[]', space=smem, size = 0x4, offset = 0x4, fixed_abs, tag = 'smem constant byte address 0x4 - core index']
  #allocation1 [shape = 'u32[144,128]{1,0:T(1,128)}', space=vmem, size = 0x12000, scoped, tag = 'internal scratch']
  #allocation2 [shape = 'f32[1,4,128]{2,1,0:T(4,128)}', space=vmem, size = 0x800, scoped, tag = 'scratch operand']
  %s0 = inlined_call_operand.hbm [shape: f32[2,4,256], index: 0, kind: input, shape index: {}]
  %s1 = inlined_call_operand.hbm [shape: f32[2,1,4], index: 1, kind: output, shape index: {}]
  %s2 = sld [smem:[#allocation0]]
  $region49: #{tpu_custom_call.1} parent=0
    _
  %s4 = ssub.s32 1, %s2
  %s5 = scalar_select 0, %s4, %s2
  $region1: #{tpu_custom_call.1} parent=0
    #allocation3 [shape = 'u8[8192]{0}', space=vmem, size = 0x2000, scoped, tag = 'input window, operand 0']
    #allocation4 [shape = 's32[2]{0}', space=sflag, size = 0x8, scoped, tag = 'scoped memory for tpu_custom_call.1']
    #allocation5 [shape = 's32[2]{0}', space=sflag, size = 0x8, scoped, tag = 'scoped memory for tpu_custom_call.1']
    #allocation6 [shape = 'u8[1024]{0}', space=vmem, size = 0x400, scoped, tag = 'output window, operand 0']
    %6 = vsyncpa [#allocation4], 0
    %s7 = scalar_lea.sflag [#allocation4], 1
    %8 = vsyncpa %s7, 0
    %9 = vsyncpa [#allocation5], 0
    %s10 = scalar_lea.sflag [#allocation5], 1
    %11 = vsyncpa %s10, 0
    loop: start=0, step=1, limit=4
    $region2: #{tpu_custom_call.1} parent=1 // loop_pre_header
      _
    $region3: #{tpu_custom_call.1} parent=1 // loop_header
      %s13 = sphi 0, %s17
      %p14 = scmp.ge.s32.totalorder %s13, 4
      %s20 = sphi 0, %s32
      %s21 = sphi 0, %s28
      %s22 = sphi 0, %s20
      %s23 = sphi 0, %s21
      %s24 = sphi 0, %s22
      %s25 = sphi 0, %s23
      %s37 = sphi 0, %s39
      %s40 = sphi 0, %s37
      %s41 = sphi 0, %s40
      %s57 = sphi 0, %s41
      %s63 = sphi 0, %s65
      %s66 = sphi 0, %s63
      %s67 = sphi 0, %s66
      %s83 = sphi 0, %s67
    $region4: #{tpu_custom_call.1} parent=1 // loop_header_branch
      %16 = sbr.rel (%p14) target = $region8
    $region5: #{tpu_custom_call.1} parent=1 // loop_body
      %s18 = ssub.s32 %s13, 1
      %s19 = ssub.s32 %s13, 2
      %s26 = sadd.s32 1, %s21
      %p27 = scmp.ge.s32.totalorder %s26, 1
      %s28 = scalar_select %p27, 0, %s26
      %s29 = sadd.s32 1, %s20
      %s30 = scalar_select %p27, %s29, %s20
      %p31 = scmp.ge.s32.totalorder %s30, 2
      %s32 = scalar_select %p31, 0, %s30
      %s33 = ssub.s32 %s20, %s32
      %s34 = ssub.s32 %s21, %s28
      %s35 = sor.u32 %s33, %s34
      %p36 = scmp.eq.s32.totalorder %s35, 0
      %s38 = sadd.s32 %s37, 1
      %s39 = scalar_select %p36, %s37, %s38
      %p42 = pneg %p36
      %p43 = scmp.eq.s32.totalorder %s13, 1
      %p44 = por %p42, %p43
      %p45 = scmp.ne.s32.totalorder %s37, %s40
      %p46 = scmp.eq.s32.totalorder %s13, 0
      %p47 = por %p45, %p46
      %p48 = scmp.ne.s32.totalorder %s37, %s40
      %p49 = scmp.eq.s32.totalorder %s18, 1
      %p50 = por %p48, %p49
      %p51 = scmp.ne.s32.totalorder %s40, %s41
      %p52 = scmp.eq.s32.totalorder %s18, 0
      %p53 = por %p51, %p52
      %p54 = scmp.ne.s32.totalorder %s40, %s41
      %p55 = scmp.eq.s32.totalorder %s19, 1
      %p56 = por %p54, %p55
      %p58 = scmp.ne.s32.totalorder %s41, %s57
      %p59 = scmp.eq.s32.totalorder %s19, 0
      %p60 = por %p58, %p59
      %s61 = ssub.s32 %s20, %s32
      %p62 = scmp.eq.s32.totalorder %s61, 0
      %s64 = sadd.s32 %s63, 1
      %s65 = scalar_select %p62, %s63, %s64
      %p68 = pneg %p62
      %p69 = scmp.eq.s32.totalorder %s13, 1
      %p70 = por %p68, %p69
      %p71 = scmp.ne.s32.totalorder %s63, %s66
      %p72 = scmp.eq.s32.totalorder %s13, 0
      %p73 = por %p71, %p72
      %p74 = scmp.ne.s32.totalorder %s63, %s66
      %p75 = scmp.eq.s32.totalorder %s18, 1
      %p76 = por %p74, %p75
      %p77 = scmp.ne.s32.totalorder %s66, %s67
      %p78 = scmp.eq.s32.totalorder %s18, 0
      %p79 = por %p77, %p78
      %p80 = scmp.ne.s32.totalorder %s66, %s67
      %p81 = scmp.eq.s32.totalorder %s19, 1
      %p82 = por %p80, %p81
      %p84 = scmp.ne.s32.totalorder %s67, %s83
      %p85 = scmp.eq.s32.totalorder %s19, 0
      %p86 = por %p84, %p85
      %p87 = scmp.le.s32.totalorder 1, %s13
      %p88 = scmp.lt.s32.totalorder %s13, 3
      %p89 = pnand %p87, %p88
      %p90 = pneg %p89
      // Predicated region
      $region9: #{tpu_custom_call.1} parent=5 // pred_check
        _
      $region10: #{tpu_custom_call.1} parent=5 // pred_check_branch
        %92 = sbr.rel (%p89) target = $region12
      $region11: #{tpu_custom_call.1} parent=5 // pred_region
        %s93 = ssub.s32 %s13, 1
      $region12: #{tpu_custom_call.1} parent=5 // pred_fallthru
        _
      %p94 = scmp.lt.s32.totalorder %s13, 2
      // Predicated region
      $region13: #{tpu_custom_call.1} parent=5 // pred_check
        %p95 = pneg %p94
      $region14: #{tpu_custom_call.1} parent=5 // pred_check_branch
        %97 = sbr.rel (%p95) target = $region16
      $region15: #{tpu_custom_call.1} parent=5 // pred_region
        // Predicated region
        $region17: #{tpu_custom_call.1} parent=15 // pred_check
          %p98 = pneg %p47
        $region18: #{tpu_custom_call.1} parent=15 // pred_check_branch
          %100 = sbr.rel (%p98) target = $region20
        $region19: #{tpu_custom_call.1} parent=15 // pred_region
          %s101 = sand.u32 %s37, 1
          %s102 = scalar_lea.sflag [#allocation4], %s101
          %s103 = sand.u32 %s37, 1
          %s104 = smul.addr %s103, 8
          %s105 = scalar_lea.vmem [#allocation3], %s104
          %s106 = smul.u32 2, %s21
          %s108 = ssub.s32 128, 128
          %109 = vsyncadd %s102, %s108
          %s110 = smul.addr %s20, 2
          %s111 = sadd.s32 %s106, %s110
          %s112 = smul.addr %s111, 64
          %s113 = scalar_lea.hbm %s0, %s112
          %s115 = sshll.u32 %s105, 4
          %s116 = int_to_ptr.vmem [resolvable:$true] %s115
          %118 = dma.hbm_to_vmem [thread:$0]  %s113, 128, %s116, %s102
        $region20: #{tpu_custom_call.1} parent=15 // pred_fallthru
          _
      $region16: #{tpu_custom_call.1} parent=5 // pred_fallthru
        _
      %p119 = scmp.le.s32.totalorder 1, %s13
      %p120 = scmp.lt.s32.totalorder %s13, 3
      %p121 = pnand %p119, %p120
      %p122 = pneg %p121
      // Predicated region
      $region21: #{tpu_custom_call.1} parent=5 // pred_check
        _
      $region22: #{tpu_custom_call.1} parent=5 // pred_check_branch
        %124 = sbr.rel (%p121) target = $region24
      $region23: #{tpu_custom_call.1} parent=5 // pred_region
        %s125 = ssub.s32 %s13, 1
        %s126 = sand.u32 %s40, 1
        %s127 = scalar_lea.sflag [#allocation4], %s126
        %s128 = sand.u32 %s40, 1
        %s129 = smul.addr %s128, 8
        %s130 = scalar_lea.vmem [#allocation3], %s129
        // Predicated region
        $region25: #{tpu_custom_call.1} parent=23 // pred_check
          %p131 = pneg %p53
        $region26: #{tpu_custom_call.1} parent=23 // pred_check_branch
          %133 = sbr.rel (%p131) target = $region28
        $region27: #{tpu_custom_call.1} parent=23 // pred_region
          %134 = dma.done %s127, 128
        $region28: #{tpu_custom_call.1} parent=23 // pred_fallthru
          _
        %s135 = sand.u32 %s40, 1
        %s136 = scalar_lea.sflag [#allocation4], %s135
        %s137 = sand.u32 %s40, 1
        %s138 = smul.addr %s137, 8
        %s139 = scalar_lea.vmem [#allocation3], %s138
        %p140 = pneg %p53
        %p141 = pneg %p50
        %p142 = pneg %p79
        %p143 = pneg %p76
        %s144 = sand.u32 %s66, 1
        %s145 = scalar_lea.sflag [#allocation5], %s144
        %s146 = sand.u32 %s66, 1
        %s147 = scalar_lea.vmem [#allocation6], %s146
        %s148 = smul.u32 2, %s23
        %p149 = scmp.eq.s32.totalorder %s23, 0
        // Predicated region
        $region29: #{tpu_custom_call.1} parent=23 // pred_check
          %p150 = pneg %p149
        $region30: #{tpu_custom_call.1} parent=23 // pred_check_branch
          %152 = sbr.rel (%p150) target = $region32
        $region31: #{tpu_custom_call.1} parent=23 // pred_region
          %153 = vst [vmem:[#allocation2] sm:$0xf] 0.0
        $region32: #{tpu_custom_call.1} parent=23 // pred_fallthru
          _
        %v154 = vld [vmem:[#allocation2] sm:$0xf]
        %v155 = vld [vmem:[%s130] sm:$0xf]
        %v156 = vld [vmem:[%s130 + $0x4] sm:$0xf]
        %v157 = vadd.f32 %v155, %v156
        %v158 = vadd.f32 %v154, %v157
        %159 = vst [vmem:[#allocation2] sm:$0xf] %v158
        // Predicated region
        $region33: #{tpu_custom_call.1} parent=23 // pred_check
          %p160 = pneg %p149
        $region34: #{tpu_custom_call.1} parent=23 // pred_check_branch
          %162 = sbr.rel (%p160) target = $region36
        $region35: #{tpu_custom_call.1} parent=23 // pred_region
          %v163 = vld [vmem:[#allocation2] sm:$0xf]
          %vm164 = vcmask 1043456
          %v165 = vsel %vm164, %v163, 0.0
          %166 = vadd.xlane.f32.xlu0 %v165
          %v167 = vpop.xlane.xlu0 %166
          %v168 = vmul.f32 %v167, 0.00390625
          %v170 = vlaneseq
          %v171 = vand.u32 %v170, 127
          %v172 = vlaneseq
          %v173 = vshrl.u32 %v172, 7
          %v174 = vsub.s32 %v171, %v173
          %v175 = vrot.slane %v168, %v174
          %vm177 = vcmask 24576
          %178 = vst.msk [vmem:[%s147] sm:$0x1] %vm177, %v175
        $region36: #{tpu_custom_call.1} parent=23 // pred_fallthru
          _
        %s179 = sand.u32 %s66, 1
        %s180 = scalar_lea.sflag [#allocation5], %s179
        %s181 = sand.u32 %s66, 1
        %s182 = scalar_lea.vmem [#allocation6], %s181
        // Predicated region
        $region37: #{tpu_custom_call.1} parent=23 // pred_check
          %p183 = pneg %p76
        $region38: #{tpu_custom_call.1} parent=23 // pred_check_branch
          %185 = sbr.rel (%p183) target = $region40
        $region39: #{tpu_custom_call.1} parent=23 // pred_region
          %s187 = ssub.s32 16, 16
          %188 = vsyncadd %s180, %s187
          %s189 = smul.addr %s22, 16
          %s190 = scalar_lea.hbm %s1, %s189
          %s192 = sshll.u32 %s182, 4
          %s193 = int_to_ptr.vmem [resolvable:$true] %s192
          %195 = dma.vmem_to_hbm [thread:$0]  %s193, 16, %s190, %s180
        $region40: #{tpu_custom_call.1} parent=23 // pred_fallthru
          _
      $region24: #{tpu_custom_call.1} parent=5 // pred_fallthru
        _
      %p196 = scmp.le.s32.totalorder 2, %s13
      // Predicated region
      $region41: #{tpu_custom_call.1} parent=5 // pred_check
        %p197 = pneg %p196
      $region42: #{tpu_custom_call.1} parent=5 // pred_check_branch
        %199 = sbr.rel (%p197) target = $region44
      $region43: #{tpu_custom_call.1} parent=5 // pred_region
        %s200 = ssub.s32 %s13, 2
        // Predicated region
        $region45: #{tpu_custom_call.1} parent=43 // pred_check
          %p201 = pneg %p82
        $region46: #{tpu_custom_call.1} parent=43 // pred_check_branch
          %203 = sbr.rel (%p201) target = $region48
        $region47: #{tpu_custom_call.1} parent=43 // pred_region
          %s204 = sand.u32 %s67, 1
          %s205 = scalar_lea.sflag [#allocation5], %s204
          %s206 = sand.u32 %s67, 1
          %s207 = scalar_lea.vmem [#allocation6], %s206
          %208 = dma.done %s205, 16
        $region48: #{tpu_custom_call.1} parent=43 // pred_fallthru
          _
      $region44: #{tpu_custom_call.1} parent=5 // pred_fallthru
        _
    $region6: #{tpu_custom_call.1} parent=1 // loop_footer
      %s17 = sadd.s32 1, %s13
    $region7: #{tpu_custom_call.1} parent=1 // loop_footer_branch
      %12 = sbr.rel target = $region3
    $region8: #{tpu_custom_call.1} parent=1 // loop_exit
      _
    %209 = vsyncpa [#allocation4], 1
    %s210 = scalar_lea.sflag [#allocation4], 1
    %211 = vsyncpa %s210, 1
    %212 = vsyncpa [#allocation5], 1
    %s213 = scalar_lea.sflag [#allocation5], 1
    %214 = vsyncpa %s213, 1

</llo_original>
